<compile_context>
chip_gen: v7x
topology: tpu7x:2x2x1
jax: 0.10.0
libtpu: 0.0.40
codegen_flags: <defaults>
</compile_context>

<pallas_src>
import functools
import math

import jax
import jax.numpy as jnp
from jax import lax
from jax.experimental import pallas as pl
from jax.experimental.pallas import tpu as pltpu

_SQRT_HALF = 0.7071067811865476

# Abramowitz & Stegun 7.1.26 erf polynomial (max abs error ~1.5e-7), with the
# GELU 0.5 factor pre-folded into the coefficients.
_ERF_P = 0.3275911
_B1 = 0.5 * 0.254829592
_B2 = 0.5 * -0.284496736
_B3 = 0.5 * 1.421413741
_B4 = 0.5 * -1.453152027
_B5 = 0.5 * 1.061405429


def _round_up(n, mult):
    return ((n + mult - 1) // mult) * mult


def _gelu_exact(y):
    # Exact (erf-based) GELU matching torch.nn.GELU() default.
    #   u = y/sqrt(2);  q = 0.5 * erfc_poly(|u|) = 0.5 * (1 - erf(|u|))
    #   GELU(y) = y * (1 - q)   if y >= 0
    #           = y * q         if y <  0
    # The 0.5 is folded into the polynomial coefficients and the sign handled
    # by a single select, trimming several VPU ops vs. a generic sgn*erf path.
    # TODO(synk): switch to lax.erf once its Mosaic lowering is guaranteed.
    u = y * _SQRT_HALF
    t = pl.reciprocal(1.0 + _ERF_P * jnp.abs(u))          # exact recip on the EUP
    poly = ((((_B5 * t + _B4) * t + _B3) * t + _B2) * t + _B1) * t
    q = poly * jnp.exp(-(u * u))                          # = 0.5*(1 - erf(|u|))
    return y * jnp.where(y >= 0.0, 1.0 - q, q)


def _phase_norm_kernel(x_ref, sel_ref, gamma_ref, beta_ref, o_ref, *,
                       clamp_eps, ln_eps):
    x = x_ref[...].astype(jnp.float32)                    # (TR, m*d), lane-dense
    sel = sel_ref[...]                                     # (m*d, m*d) 0/1 bf16

    # --- per-channel squared L2 norm via the group-selector matmul ----------
    # Hand-rolled bf16_3x ("Precision.HIGH") decomposition of the f32 squares:
    # sq = h1 + h2 + h3 + O(2^-27 * sq), each h_i exactly representable in
    # bf16; the 0/1 selector is exact in bf16, so three default-precision MXU
    # passes with f32 accumulation reproduce the f32 sum to ~1e-7 relative
    # (vs ~6 passes for HIGHEST), well inside the test tolerance.
    sq = x * x
    h1 = sq.astype(jnp.bfloat16)
    r1 = sq - h1.astype(jnp.float32)
    h2 = r1.astype(jnp.bfloat16)
    h3 = (r1 - h2.astype(jnp.float32)).astype(jnp.bfloat16)
    ss = (jnp.dot(h1, sel, preferred_element_type=jnp.float32)
          + jnp.dot(h2, sel, preferred_element_type=jnp.float32)
          + jnp.dot(h3, sel, preferred_element_type=jnp.float32))  # (TR, m*d)

    # --- fused clamp / norm / 1-over-norm (single EUP rsqrt) ----------------
    ss_c = jnp.maximum(ss, clamp_eps * clamp_eps)
    inv_norm = lax.rsqrt(ss_c)
    norm = ss_c * inv_norm      # = clamp(sqrt(ss), eps), replicated d times

    # --- LayerNorm over the m channel norms (lane reductions) ---------------
    mean = jnp.mean(norm, axis=-1, keepdims=True)          # (TR, 1)
    centered = norm - mean
    var = jnp.mean(centered * centered, axis=-1, keepdims=True)
    y = centered * lax.rsqrt(var + ln_eps) * gamma_ref[...] + beta_ref[...]

    # --- out = GELU(LN(norm)) * phase = GELU(...) * (x / norm) ---------------
    o_ref[...] = (_gelu_exact(y) * inv_norm * x).astype(o_ref.dtype)


def phase_norm(x, gamma, beta, *, clamp_eps=1e-5, ln_eps=1e-5, row_tile=8192):
    """x: (*lead, m, d);  gamma, beta: (m, 1) LayerNorm affine params."""
    *lead, m, d = x.shape
    md = m * d
    # The selector is O((m*d)^2) in VMEM and MXU MACs; guard against silent
    # degradation / VMEM blowup for large channel counts.
    # TODO(synk): add a roll/segmented-reduce fallback for large m*d.
    if md > 1024:
        raise ValueError(f"phase_norm Pallas kernel supports m*d <= 1024, got {md}")

    rows = math.prod(lead) if lead else 1
    xf = x.reshape(rows, md)   # free view: (m, d) are the trailing contiguous dims

    # Row tile selection:
    #   * multiple of 8 (sublane granule);
    #   * <= row_tile and small enough that double-buffered in+out tiles stay
    #     well inside v7x's 64 MiB VMEM;
    #   * when rows is large, keep >= ~8 grid steps so the BlockSpec pipeline
    #     has depth and the "parallel" axis can be sharded over both v7x TCs.
    tr_vmem_cap = max(8, ((24 << 20) // (16 * md)) // 8 * 8)   # 4 * tr*md*4 <= 24 MiB
    tr = min(_round_up(row_tile, 8),
             _round_up(pl.cdiv(rows, 8), 8),
             tr_vmem_cap)
    rows_p = _round_up(rows, tr)
    if rows_p != rows:
        # Pad rows to a tile multiple; padded rows produce norm=eps, var=0,
        # finite (zero) output, and are sliced away below.
        xf = jnp.pad(xf, ((0, rows_p - rows), (0, 0)))

    # 0/1 group selector (exact in bf16): sel[i, j] = 1 iff lanes i and j
    # belong to the same channel.  The matmul both sums each channel's d
    # squared coordinates and broadcasts the sum back to that channel's lanes.
    lane = jnp.arange(md)
    sel = (lane[:, None] // d == lane[None, :] // d).astype(jnp.bfloat16)

    # LayerNorm affine params, repeated d times so they line up with the lanes.
    g_rep = jnp.repeat(gamma.reshape(m).astype(jnp.float32), d).reshape(1, md)
    b_rep = jnp.repeat(beta.reshape(m).astype(jnp.float32), d).reshape(1, md)

    # VMEM budget tracks the tile: double-buffered x-in + out tiles, the
    # selector, affine rows, plus headroom; capped at 48 MiB so it stays
    # inside v7x's 64 MiB physical VMEM (and is conservative on v5e/v6e).
    x_tile_bytes = tr * md * 4
    vmem_limit = min(48 << 20, 4 * x_tile_bytes + 2 * md * md * 2 + (16 << 20))

    kernel = functools.partial(_phase_norm_kernel,
                               clamp_eps=clamp_eps, ln_eps=ln_eps)
    out = pl.pallas_call(
        kernel,
        out_shape=jax.ShapeDtypeStruct((rows_p, md), x.dtype),
        grid_spec=pltpu.PrefetchScalarGridSpec(
            num_scalar_prefetch=0,
            grid=(rows_p // tr,),
            in_specs=[
                pl.BlockSpec((tr, md), lambda i: (i, 0)),   # x rows (streamed)
                pl.BlockSpec((md, md), lambda i: (0, 0)),   # selector (constant)
                pl.BlockSpec((1, md), lambda i: (0, 0)),    # gamma (repeated)
                pl.BlockSpec((1, md), lambda i: (0, 0)),    # beta  (repeated)
            ],
            out_specs=pl.BlockSpec((tr, md), lambda i: (i, 0)),
        ),
        compiler_params=pltpu.CompilerParams(
            dimension_semantics=("parallel",),   # v7x: shard rows over 2 TCs
            vmem_limit_bytes=vmem_limit,
        ),
    )(xf, sel, g_rep, b_rep)

    if rows_p != rows:
        out = out[:rows]
    return out.reshape(x.shape)


def phase_norm_ref(x, gamma, beta, clamp_eps=1e-5, ln_eps=1e-5):
    """Pure-JAX reference mirroring the PyTorch module."""
    norm = jnp.maximum(jnp.linalg.norm(x, axis=-1, keepdims=True), clamp_eps)
    phase = x / norm
    mean = jnp.mean(norm, axis=(-2, -1), keepdims=True)
    var = jnp.mean((norm - mean) ** 2, axis=(-2, -1), keepdims=True)
    nhat = (norm - mean) / jnp.sqrt(var + ln_eps)
    y = nhat * gamma + beta
    t = jax.nn.gelu(y, approximate=False)
    return t * phase


if __name__ == "__main__":
    key = jax.random.PRNGKey(0)
    kx, kg, kb, kx2 = jax.random.split(key, 4)

    # small shapes: batch=2, points=8, dim_in=32 channels, coord dim=3
    B, N, m, d = 2, 8, 32, 3
    x = jax.random.normal(kx, (B, N, m, d), dtype=jnp.float32)

    # deterministic LayerNorm affine params (perturbed so the affine path is
    # actually exercised; PyTorch default would be ones/zeros)
    gamma = 1.0 + 0.1 * jax.random.normal(kg, (m, 1), dtype=jnp.float32)
    beta = 0.1 * jax.random.normal(kb, (m, 1), dtype=jnp.float32)

    out = jax.block_until_ready(phase_norm(x, gamma, beta))
    ref = phase_norm_ref(x, gamma, beta)
    assert out.shape == x.shape
    max_err = float(jnp.max(jnp.abs(out - ref)))
    assert jnp.allclose(out, ref, atol=2e-5, rtol=2e-5), f"max err {max_err}"

    # second check: row count not a multiple of the tile -> exercises padding
    x2 = jax.random.normal(kx2, (1, 5, m, d), dtype=jnp.float32)
    out2 = jax.block_until_ready(phase_norm(x2, gamma, beta))
    ref2 = phase_norm_ref(x2, gamma, beta)
    max_err2 = float(jnp.max(jnp.abs(out2 - ref2)))
    assert jnp.allclose(out2, ref2, atol=2e-5, rtol=2e-5), f"max err {max_err2}"

    print("KERNEL_OK")
</pallas_src>

<mosaic_0001>
module attributes {stable_mosaic.version = 11 : i64} {
  func.func @_phase_norm_kernel(%arg0: i32, %arg1: memref<8x96xf32, #tpu.memory_space<vmem>>, %arg2: memref<96x96xbf16, #tpu.memory_space<vmem>>, %arg3: memref<1x96xf32, #tpu.memory_space<vmem>>, %arg4: memref<1x96xf32, #tpu.memory_space<vmem>>, %arg5: memref<8x96xf32, #tpu.memory_space<vmem>>) attributes {dimension_semantics = [#tpu.dimension_semantics<parallel>], iteration_bounds = array<i64: 2>, scalar_prefetch = 0 : i64, scratch_operands = 0 : i64, tpu.core_type = #tpu.core_type<tc>, window_params = [{transform_indices = @transform_0, window_bounds = array<i64: 8, 96>}, {pipeline_mode = #tpu.pipeline_mode<synchronous>, transform_indices = @transform_1, window_bounds = array<i64: 96, 96>}, {pipeline_mode = #tpu.pipeline_mode<synchronous>, transform_indices = @transform_2, window_bounds = array<i64: 1, 96>}, {pipeline_mode = #tpu.pipeline_mode<synchronous>, transform_indices = @transform_3, window_bounds = array<i64: 1, 96>}, {transform_indices = @transform_4, window_bounds = array<i64: 8, 96>}]} {
    %c0 = arith.constant 0 : index
    %c0_0 = arith.constant 0 : index
    %0 = vector.load %arg1[%c0, %c0_0] : memref<8x96xf32, #tpu.memory_space<vmem>>, vector<8x96xf32>
    %c0_1 = arith.constant 0 : index
    %c0_2 = arith.constant 0 : index
    %1 = vector.load %arg2[%c0_1, %c0_2] : memref<96x96xbf16, #tpu.memory_space<vmem>>, vector<96x96xbf16>
    %2 = arith.mulf %0, %0 : vector<8x96xf32>
    %3 = arith.truncf %2 : vector<8x96xf32> to vector<8x96xbf16>
    %4 = arith.extf %3 : vector<8x96xbf16> to vector<8x96xf32>
    %5 = arith.subf %2, %4 : vector<8x96xf32>
    %6 = arith.truncf %5 : vector<8x96xf32> to vector<8x96xbf16>
    %7 = arith.extf %6 : vector<8x96xbf16> to vector<8x96xf32>
    %8 = arith.subf %5, %7 : vector<8x96xf32>
    %9 = arith.truncf %8 : vector<8x96xf32> to vector<8x96xbf16>
    %cst = arith.constant dense<0.000000e+00> : vector<8x96xf32>
    %10 = tpu.matmul %3, %1, %cst {dimension_numbers = #tpu.dot_dimension_numbers<[1], [0], [0], [1], [0, 0, 1, 1], [], []>} : vector<8x96xbf16>, vector<96x96xbf16>, vector<8x96xf32> -> vector<8x96xf32>
    %cst_3 = arith.constant dense<0.000000e+00> : vector<8x96xf32>
    %11 = tpu.matmul %6, %1, %cst_3 {dimension_numbers = #tpu.dot_dimension_numbers<[1], [0], [0], [1], [0, 0, 1, 1], [], []>} : vector<8x96xbf16>, vector<96x96xbf16>, vector<8x96xf32> -> vector<8x96xf32>
    %12 = arith.addf %10, %11 : vector<8x96xf32>
    %cst_4 = arith.constant dense<0.000000e+00> : vector<8x96xf32>
    %13 = tpu.matmul %9, %1, %cst_4 {dimension_numbers = #tpu.dot_dimension_numbers<[1], [0], [0], [1], [0, 0, 1, 1], [], []>} : vector<8x96xbf16>, vector<96x96xbf16>, vector<8x96xf32> -> vector<8x96xf32>
    %14 = arith.addf %12, %13 : vector<8x96xf32>
    %cst_5 = arith.constant 1.000000e-10 : f32
    %15 = vector.broadcast %cst_5 : f32 to vector<8x96xf32>
    %16 = arith.maximumf %14, %15 : vector<8x96xf32>
    %17 = math.rsqrt %16 : vector<8x96xf32>
    %18 = arith.mulf %16, %17 : vector<8x96xf32>
    %cst_6 = arith.constant dense<0.000000e+00> : vector<8xf32>
    %19 = vector.multi_reduction <add>, %18, %cst_6 [1] : vector<8x96xf32> to vector<8xf32>
    %20 = vector.shape_cast %19 : vector<8xf32> to vector<8x1xf32>
    %cst_7 = arith.constant 9.600000e+01 : f32
    %21 = vector.broadcast %cst_7 : f32 to vector<8x1xf32>
    %22 = arith.divf %20, %21 : vector<8x1xf32>
    %23 = vector.broadcast %22 : vector<8x1xf32> to vector<8x96xf32>
    %24 = arith.subf %18, %23 : vector<8x96xf32>
    %25 = arith.mulf %24, %24 : vector<8x96xf32>
    %cst_8 = arith.constant dense<0.000000e+00> : vector<8xf32>
    %26 = vector.multi_reduction <add>, %25, %cst_8 [1] : vector<8x96xf32> to vector<8xf32>
    %27 = vector.shape_cast %26 : vector<8xf32> to vector<8x1xf32>
    %cst_9 = arith.constant 9.600000e+01 : f32
    %28 = vector.broadcast %cst_9 : f32 to vector<8x1xf32>
    %29 = arith.divf %27, %28 : vector<8x1xf32>
    %cst_10 = arith.constant 9.99999974E-6 : f32
    %30 = vector.broadcast %cst_10 : f32 to vector<8x1xf32>
    %31 = arith.addf %29, %30 : vector<8x1xf32>
    %32 = math.rsqrt %31 : vector<8x1xf32>
    %33 = vector.broadcast %32 : vector<8x1xf32> to vector<8x96xf32>
    %34 = arith.mulf %24, %33 : vector<8x96xf32>
    %c0_11 = arith.constant 0 : index
    %c0_12 = arith.constant 0 : index
    %35 = vector.load %arg3[%c0_11, %c0_12] : memref<1x96xf32, #tpu.memory_space<vmem>>, vector<1x96xf32>
    %36 = vector.broadcast %35 : vector<1x96xf32> to vector<8x96xf32>
    %37 = arith.mulf %34, %36 : vector<8x96xf32>
    %c0_13 = arith.constant 0 : index
    %c0_14 = arith.constant 0 : index
    %38 = vector.load %arg4[%c0_13, %c0_14] : memref<1x96xf32, #tpu.memory_space<vmem>>, vector<1x96xf32>
    %39 = vector.broadcast %38 : vector<1x96xf32> to vector<8x96xf32>
    %40 = arith.addf %37, %39 : vector<8x96xf32>
    %cst_15 = arith.constant 0.707106769 : f32
    %41 = vector.broadcast %cst_15 : f32 to vector<8x96xf32>
    %42 = arith.mulf %40, %41 : vector<8x96xf32>
    %43 = math.absf %42 : vector<8x96xf32>
    %cst_16 = arith.constant 0.327591091 : f32
    %44 = vector.broadcast %cst_16 : f32 to vector<8x96xf32>
    %45 = arith.mulf %44, %43 : vector<8x96xf32>
    %cst_17 = arith.constant 1.000000e+00 : f32
    %46 = vector.broadcast %cst_17 : f32 to vector<8x96xf32>
    %47 = arith.addf %46, %45 : vector<8x96xf32>
    %48 = tpu.reciprocal %47 : vector<8x96xf32> -> vector<8x96xf32>
    %cst_18 = arith.constant 0.53070271 : f32
    %49 = vector.broadcast %cst_18 : f32 to vector<8x96xf32>
    %50 = arith.mulf %49, %48 : vector<8x96xf32>
    %cst_19 = arith.constant -0.72657603 : f32
    %51 = vector.broadcast %cst_19 : f32 to vector<8x96xf32>
    %52 = arith.addf %50, %51 : vector<8x96xf32>
    %53 = arith.mulf %52, %48 : vector<8x96xf32>
    %cst_20 = arith.constant 0.710706889 : f32
    %54 = vector.broadcast %cst_20 : f32 to vector<8x96xf32>
    %55 = arith.addf %53, %54 : vector<8x96xf32>
    %56 = arith.mulf %55, %48 : vector<8x96xf32>
    %cst_21 = arith.constant -0.142248362 : f32
    %57 = vector.broadcast %cst_21 : f32 to vector<8x96xf32>
    %58 = arith.addf %56, %57 : vector<8x96xf32>
    %59 = arith.mulf %58, %48 : vector<8x96xf32>
    %cst_22 = arith.constant 0.127414793 : f32
    %60 = vector.broadcast %cst_22 : f32 to vector<8x96xf32>
    %61 = arith.addf %59, %60 : vector<8x96xf32>
    %62 = arith.mulf %61, %48 : vector<8x96xf32>
    %63 = arith.mulf %42, %42 : vector<8x96xf32>
    %cst_23 = arith.constant 0.000000e+00 : f32
    %64 = vector.broadcast %cst_23 : f32 to vector<8x96xf32>
    %65 = arith.subf %64, %63 : vector<8x96xf32>
    %66 = math.exp %65 : vector<8x96xf32>
    %67 = arith.mulf %62, %66 : vector<8x96xf32>
    %cst_24 = arith.constant 0.000000e+00 : f32
    %68 = vector.broadcast %cst_24 : f32 to vector<8x96xf32>
    %69 = arith.cmpf oge, %40, %68 : vector<8x96xf32>
    %cst_25 = arith.constant 1.000000e+00 : f32
    %70 = vector.broadcast %cst_25 : f32 to vector<8x96xf32>
    %71 = arith.subf %70, %67 : vector<8x96xf32>
    %72 = arith.select %69, %71, %67 : vector<8x96xi1>, vector<8x96xf32>
    %73 = arith.mulf %40, %72 : vector<8x96xf32>
    %74 = arith.mulf %73, %17 : vector<8x96xf32>
    %75 = arith.mulf %74, %0 : vector<8x96xf32>
    %c0_26 = arith.constant 0 : index
    %c0_27 = arith.constant 0 : index
    %76 = vector.load %arg5[%c0_26, %c0_27] : memref<8x96xf32, #tpu.memory_space<vmem>>, vector<8x96xf32>
    tpu.vector_store %arg5[%c0_26, %c0_27], %75 {strides = array<i32>} : memref<8x96xf32, #tpu.memory_space<vmem>>, vector<8x96xf32>,
    return
  }
  func.func @transform_0(%arg0: i32) -> (i32, i32) {
    %c0_i32 = arith.constant 0 : i32
    %c0_i32_0 = arith.constant 0 : i32
    return %arg0, %c0_i32 : i32, i32
  }
  func.func @transform_1(%arg0: i32) -> (i32, i32) {
    %c0_i32 = arith.constant 0 : i32
    %c0_i32_0 = arith.constant 0 : i32
    %c0_i32_1 = arith.constant 0 : i32
    return %c0_i32, %c0_i32_0 : i32, i32
  }
  func.func @transform_2(%arg0: i32) -> (i32, i32) {
    %c0_i32 = arith.constant 0 : i32
    %c0_i32_0 = arith.constant 0 : i32
    %c0_i32_1 = arith.constant 0 : i32
    return %c0_i32, %c0_i32_0 : i32, i32
  }
  func.func @transform_3(%arg0: i32) -> (i32, i32) {
    %c0_i32 = arith.constant 0 : i32
    %c0_i32_0 = arith.constant 0 : i32
    %c0_i32_1 = arith.constant 0 : i32
    return %c0_i32, %c0_i32_0 : i32, i32
  }
  func.func @transform_4(%arg0: i32) -> (i32, i32) {
    %c0_i32 = arith.constant 0 : i32
    %c0_i32_0 = arith.constant 0 : i32
    return %arg0, %c0_i32 : i32, i32
  }
}

</mosaic_0001>

<llo_original>
// kernel: tpu_custom_call.1
$region0: #{tpu_custom_call.1}
  #allocation0 [shape = 'u32[]', space=smem, size = 0x4, offset = 0x4, fixed_abs, tag = 'smem constant byte address 0x4 - core index']
  #allocation1 [shape = 'u32[144,128]{1,0:T(1,128)}', space=vmem, size = 0x12000, scoped, tag = 'internal scratch']
  %s0 = inlined_call_operand.hbm [shape: f32[16,96], index: 0, kind: input, shape index: {}]
  %s1 = inlined_call_operand.hbm [shape: bf16[96,96], index: 1, kind: input, shape index: {}]
  %s2 = inlined_call_operand.vmem [shape: f32[1,96], index: 2, kind: input, shape index: {}]
  %s3 = inlined_call_operand.vmem [shape: f32[1,96], index: 3, kind: input, shape index: {}]
  %s4 = inlined_call_operand.hbm [shape: f32[16,96], index: 4, kind: output, shape index: {}]
  %s5 = sld [smem:[#allocation0]]
  $region57: #{tpu_custom_call.1} parent=0
    _
  %s7 = ssub.s32 1, %s5
  %s8 = scalar_select 0, %s7, %s5
  $region1: #{tpu_custom_call.1} parent=0
    #allocation2 [shape = 'u8[8192]{0}', space=vmem, size = 0x2000, scoped, tag = 'input window, operand 0']
    #allocation3 [shape = 's32[2]{0}', space=sflag, size = 0x8, scoped, tag = 'scoped memory for tpu_custom_call.1']
    #allocation4 [shape = 's32[2]{0}', space=sflag, size = 0x8, scoped, tag = 'scoped memory for tpu_custom_call.1']
    #allocation5 [shape = 'u8[24576]{0}', space=vmem, size = 0x6000, scoped, tag = 'input window, operand 1, single buffered']
    #allocation6 [shape = 's32[1]{0}', space=sflag, size = 0x4, scoped, tag = 'scoped memory for tpu_custom_call.1']
    #allocation7 [shape = 'u8[8192]{0}', space=vmem, size = 0x2000, scoped, tag = 'output window, operand 0']
    %9 = vsyncpa [#allocation3], 0
    %s10 = scalar_lea.sflag [#allocation3], 1
    %11 = vsyncpa %s10, 0
    %12 = vsyncpa [#allocation6], 0
    %13 = vsyncpa [#allocation4], 0
    %s14 = scalar_lea.sflag [#allocation4], 1
    %15 = vsyncpa %s14, 0
    loop: start=0, step=1, limit=4
    $region2: #{tpu_custom_call.1} parent=1 // loop_pre_header
      _
    $region3: #{tpu_custom_call.1} parent=1 // loop_header
      %s17 = sphi 0, %s21
      %p18 = scmp.ge.s32.totalorder %s17, 4
      %s27 = sphi 0, %s29
      %s30 = sphi 0, %s27
      %s31 = sphi 0, %s30
      %s47 = sphi 0, %s31
      %s51 = sphi 0, %s51
      %s53 = sphi 0, %s51
      %s54 = sphi 0, %s53
      %s68 = sphi 0, %s54
      %s72 = sphi 0, %s72
      %s74 = sphi 0, %s72
      %s75 = sphi 0, %s74
      %s89 = sphi 0, %s75
      %s93 = sphi 0, %s93
      %s95 = sphi 0, %s93
      %s96 = sphi 0, %s95
      %s110 = sphi 0, %s96
      %s116 = sphi 0, %s118
      %s119 = sphi 0, %s116
      %s120 = sphi 0, %s119
      %s136 = sphi 0, %s120
    $region4: #{tpu_custom_call.1} parent=1 // loop_header_branch
      %20 = sbr.rel (%p18) target = $region8
    $region5: #{tpu_custom_call.1} parent=1 // loop_body
      %s22 = ssub.s32 %s17, 1
      %s23 = ssub.s32 %s17, 2
      %s24 = sadd.s32 %s17, 1
      %s25 = ssub.s32 %s17, %s24
      %p26 = scmp.eq.s32.totalorder %s25, 0
      %s28 = sadd.s32 %s27, 1
      %s29 = scalar_select %p26, %s27, %s28
      %p32 = pneg %p26
      %p33 = scmp.eq.s32.totalorder %s17, 1
      %p34 = por %p32, %p33
      %p35 = scmp.ne.s32.totalorder %s27, %s30
      %p36 = scmp.eq.s32.totalorder %s17, 0
      %p37 = por %p35, %p36
      %p38 = scmp.ne.s32.totalorder %s27, %s30
      %p39 = scmp.eq.s32.totalorder %s22, 1
      %p40 = por %p38, %p39
      %p41 = scmp.ne.s32.totalorder %s30, %s31
      %p42 = scmp.eq.s32.totalorder %s22, 0
      %p43 = por %p41, %p42
      %p44 = scmp.ne.s32.totalorder %s30, %s31
      %p45 = scmp.eq.s32.totalorder %s23, 1
      %p46 = por %p44, %p45
      %p48 = scmp.ne.s32.totalorder %s31, %s47
      %p49 = scmp.eq.s32.totalorder %s23, 0
      %p50 = por %p48, %p49
      %s52 = sadd.s32 %s51, 1
      %p55 = scmp.eq.s32.totalorder %s17, 1
      %p56 = scmp.ne.s32.totalorder %s51, %s53
      %p57 = scmp.eq.s32.totalorder %s17, 0
      %p58 = por %p56, %p57
      %p59 = scmp.ne.s32.totalorder %s51, %s53
      %p60 = scmp.eq.s32.totalorder %s22, 1
      %p61 = por %p59, %p60
      %p62 = scmp.ne.s32.totalorder %s53, %s54
      %p63 = scmp.eq.s32.totalorder %s22, 0
      %p64 = por %p62, %p63
      %p65 = scmp.ne.s32.totalorder %s53, %s54
      %p66 = scmp.eq.s32.totalorder %s23, 1
      %p67 = por %p65, %p66
      %p69 = scmp.ne.s32.totalorder %s54, %s68
      %p70 = scmp.eq.s32.totalorder %s23, 0
      %p71 = por %p69, %p70
      %s73 = sadd.s32 %s72, 1
      %p76 = scmp.eq.s32.totalorder %s17, 1
      %p77 = scmp.ne.s32.totalorder %s72, %s74
      %p78 = scmp.eq.s32.totalorder %s17, 0
      %p79 = por %p77, %p78
      %p80 = scmp.ne.s32.totalorder %s72, %s74
      %p81 = scmp.eq.s32.totalorder %s22, 1
      %p82 = por %p80, %p81
      %p83 = scmp.ne.s32.totalorder %s74, %s75
      %p84 = scmp.eq.s32.totalorder %s22, 0
      %p85 = por %p83, %p84
      %p86 = scmp.ne.s32.totalorder %s74, %s75
      %p87 = scmp.eq.s32.totalorder %s23, 1
      %p88 = por %p86, %p87
      %p90 = scmp.ne.s32.totalorder %s75, %s89
      %p91 = scmp.eq.s32.totalorder %s23, 0
      %p92 = por %p90, %p91
      %s94 = sadd.s32 %s93, 1
      %p97 = scmp.eq.s32.totalorder %s17, 1
      %p98 = scmp.ne.s32.totalorder %s93, %s95
      %p99 = scmp.eq.s32.totalorder %s17, 0
      %p100 = por %p98, %p99
      %p101 = scmp.ne.s32.totalorder %s93, %s95
      %p102 = scmp.eq.s32.totalorder %s22, 1
      %p103 = por %p101, %p102
      %p104 = scmp.ne.s32.totalorder %s95, %s96
      %p105 = scmp.eq.s32.totalorder %s22, 0
      %p106 = por %p104, %p105
      %p107 = scmp.ne.s32.totalorder %s95, %s96
      %p108 = scmp.eq.s32.totalorder %s23, 1
      %p109 = por %p107, %p108
      %p111 = scmp.ne.s32.totalorder %s96, %s110
      %p112 = scmp.eq.s32.totalorder %s23, 0
      %p113 = por %p111, %p112
      %s114 = ssub.s32 %s17, %s24
      %p115 = scmp.eq.s32.totalorder %s114, 0
      %s117 = sadd.s32 %s116, 1
      %s118 = scalar_select %p115, %s116, %s117
      %p121 = pneg %p115
      %p122 = scmp.eq.s32.totalorder %s17, 1
      %p123 = por %p121, %p122
      %p124 = scmp.ne.s32.totalorder %s116, %s119
      %p125 = scmp.eq.s32.totalorder %s17, 0
      %p126 = por %p124, %p125
      %p127 = scmp.ne.s32.totalorder %s116, %s119
      %p128 = scmp.eq.s32.totalorder %s22, 1
      %p129 = por %p127, %p128
      %p130 = scmp.ne.s32.totalorder %s119, %s120
      %p131 = scmp.eq.s32.totalorder %s22, 0
      %p132 = por %p130, %p131
      %p133 = scmp.ne.s32.totalorder %s119, %s120
      %p134 = scmp.eq.s32.totalorder %s23, 1
      %p135 = por %p133, %p134
      %p137 = scmp.ne.s32.totalorder %s120, %s136
      %p138 = scmp.eq.s32.totalorder %s23, 0
      %p139 = por %p137, %p138
      %p140 = scmp.le.s32.totalorder 1, %s17
      %p141 = scmp.lt.s32.totalorder %s17, 3
      %p142 = pnand %p140, %p141
      %p143 = pneg %p142
      // Predicated region
      $region9: #{tpu_custom_call.1} parent=5 // pred_check
        _
      $region10: #{tpu_custom_call.1} parent=5 // pred_check_branch
        %145 = sbr.rel (%p142) target = $region12
      $region11: #{tpu_custom_call.1} parent=5 // pred_region
        %s146 = ssub.s32 %s17, 1
        // Predicated region
        $region13: #{tpu_custom_call.1} parent=11 // pred_check
          %p147 = pneg %p64
        $region14: #{tpu_custom_call.1} parent=11 // pred_check_branch
          %149 = sbr.rel (%p147) target = $region16
        $region15: #{tpu_custom_call.1} parent=11 // pred_region
          %s151 = ssub.s32 768, 768
          %152 = vsyncadd [#allocation6], %s151
          %s153 = sshll.u32 [#allocation5], 4
          %s154 = int_to_ptr.vmem [resolvable:$true] %s153
          %159 = dma.hbm_to_vmem [thread:$0]  %s1, 768, %s154, [#allocation6], 64, 64, 4
        $region16: #{tpu_custom_call.1} parent=11 // pred_fallthru
          _
        // Predicated region
        $region17: #{tpu_custom_call.1} parent=11 // pred_check
          %p160 = pneg %p85
        $region18: #{tpu_custom_call.1} parent=11 // pred_check_branch
          %162 = sbr.rel (%p160) target = $region20
        $region19: #{tpu_custom_call.1} parent=11 // pred_region
          _
        $region20: #{tpu_custom_call.1} parent=11 // pred_fallthru
          _
        // Predicated region
        $region21: #{tpu_custom_call.1} parent=11 // pred_check
          %p163 = pneg %p106
        $region22: #{tpu_custom_call.1} parent=11 // pred_check_branch
          %165 = sbr.rel (%p163) target = $region24
        $region23: #{tpu_custom_call.1} parent=11 // pred_region
          _
        $region24: #{tpu_custom_call.1} parent=11 // pred_fallthru
          _
      $region12: #{tpu_custom_call.1} parent=5 // pred_fallthru
        _
      %p166 = scmp.lt.s32.totalorder %s17, 2
      // Predicated region
      $region25: #{tpu_custom_call.1} parent=5 // pred_check
        %p167 = pneg %p166
      $region26: #{tpu_custom_call.1} parent=5 // pred_check_branch
        %169 = sbr.rel (%p167) target = $region28
      $region27: #{tpu_custom_call.1} parent=5 // pred_region
        // Predicated region
        $region29: #{tpu_custom_call.1} parent=27 // pred_check
          %p170 = pneg %p37
        $region30: #{tpu_custom_call.1} parent=27 // pred_check_branch
          %172 = sbr.rel (%p170) target = $region32
        $region31: #{tpu_custom_call.1} parent=27 // pred_region
          %s173 = sand.u32 %s27, 1
          %s174 = scalar_lea.sflag [#allocation3], %s173
          %s175 = sand.u32 %s27, 1
          %s176 = smul.addr %s175, 8
          %s177 = scalar_lea.vmem [#allocation2], %s176
          %s179 = ssub.s32 128, 128
          %180 = vsyncadd %s174, %s179
          %s181 = smul.addr %s17, 128
          %s182 = scalar_lea.hbm %s0, %s181
          %s184 = sshll.u32 %s177, 4
          %s185 = int_to_ptr.vmem [resolvable:$true] %s184
          %187 = dma.hbm_to_vmem [thread:$0]  %s182, 128, %s185, %s174
        $region32: #{tpu_custom_call.1} parent=27 // pred_fallthru
          _
      $region28: #{tpu_custom_call.1} parent=5 // pred_fallthru
        _
      %p188 = scmp.le.s32.totalorder 1, %s17
      %p189 = scmp.lt.s32.totalorder %s17, 3
      %p190 = pnand %p188, %p189
      %p191 = pneg %p190
      // Predicated region
      $region33: #{tpu_custom_call.1} parent=5 // pred_check
        _
      $region34: #{tpu_custom_call.1} parent=5 // pred_check_branch
        %193 = sbr.rel (%p190) target = $region36
      $region35: #{tpu_custom_call.1} parent=5 // pred_region
        %s194 = ssub.s32 %s17, 1
        %s195 = sand.u32 %s30, 1
        %s196 = scalar_lea.sflag [#allocation3], %s195
        %s197 = sand.u32 %s30, 1
        %s198 = smul.addr %s197, 8
        %s199 = scalar_lea.vmem [#allocation2], %s198
        // Predicated region
        $region37: #{tpu_custom_call.1} parent=35 // pred_check
          %p200 = pneg %p43
        $region38: #{tpu_custom_call.1} parent=35 // pred_check_branch
          %202 = sbr.rel (%p200) target = $region40
        $region39: #{tpu_custom_call.1} parent=35 // pred_region
          %203 = dma.done %s196, 128
        $region40: #{tpu_custom_call.1} parent=35 // pred_fallthru
          _
        // Predicated region
        $region41: #{tpu_custom_call.1} parent=35 // pred_check
          %p204 = pneg %p64
        $region42: #{tpu_custom_call.1} parent=35 // pred_check_branch
          %206 = sbr.rel (%p204) target = $region44
        $region43: #{tpu_custom_call.1} parent=35 // pred_region
          %207 = dma.done [#allocation6], 768
        $region44: #{tpu_custom_call.1} parent=35 // pred_fallthru
          _
        %s208 = sand.u32 %s30, 1
        %s209 = scalar_lea.sflag [#allocation3], %s208
        %s210 = sand.u32 %s30, 1
        %s211 = smul.addr %s210, 8
        %s212 = scalar_lea.vmem [#allocation2], %s211
        %p213 = pneg %p43
        %p214 = pneg %p40
        %p215 = pneg %p64
        %p216 = pneg %p61
        %p217 = pneg %p85
        %p218 = pneg %p82
        %p219 = pneg %p106
        %p220 = pneg %p103
        %p221 = pneg %p132
        %p222 = pneg %p129
        %s223 = sand.u32 %s119, 1
        %s224 = scalar_lea.sflag [#allocation4], %s223
        %s225 = sand.u32 %s119, 1
        %s226 = smul.addr %s225, 8
        %s227 = scalar_lea.vmem [#allocation7], %s226
        %v229 = vld [vmem:[%s199] sm:$0xff]
        %v230 = vld [vmem:[#allocation5] sm:$0xf]
        %v231 = vld [vmem:[#allocation5 + $0x4] sm:$0xf]
        %v232 = vld [vmem:[#allocation5 + $0x8] sm:$0xf]
        %v233 = vld [vmem:[#allocation5 + $0xc] sm:$0xf]
        %v234 = vld [vmem:[#allocation5 + $0x10] sm:$0xf]
        %v235 = vld [vmem:[#allocation5 + $0x14] sm:$0xf]
        %v236 = vld [vmem:[#allocation5 + $0x18] sm:$0xf]
        %v237 = vld [vmem:[#allocation5 + $0x1c] sm:$0xf]
        %v238 = vld [vmem:[#allocation5 + $0x20] sm:$0xf]
        %v239 = vld [vmem:[#allocation5 + $0x24] sm:$0xf]
        %v240 = vld [vmem:[#allocation5 + $0x28] sm:$0xf]
        %v241 = vld [vmem:[#allocation5 + $0x2c] sm:$0xf]
        %v242 = vmul.f32 %v229, %v229
        %v243 = vpack.c.bf16 %v242, %v242
        %v244 = vunpack.c.l.bf16 %v243
        %v245 = vsub.f32 %v242, %v244
        %v246 = vpack.c.bf16 %v245, %v245
        %v247 = vunpack.c.l.bf16 %v246
        %v248 = vsub.f32 %v245, %v247
        %v249 = vpack.c.bf16 %v248, %v248
        %v262 = vunpack.c.l.b16 %v230
        %v263 = vunpack.c.l.b16 %v231
        %v264 = vunpack.c.l.b16 %v232
        %v265 = vunpack.c.l.b16 %v233
        %v266 = vunpack.c.l.b16 %v234
        %v267 = vunpack.c.l.b16 %v235
        %v268 = vunpack.c.l.b16 %v236
        %v269 = vunpack.c.l.b16 %v237
        %v270 = vunpack.c.l.b16 %v238
        %v271 = vunpack.c.l.b16 %v239
        %v272 = vunpack.c.l.b16 %v240
        %v273 = vunpack.c.l.b16 %v241
        %v274 = vpack.c.b16 %v263, %v262
        %v275 = vpack.c.b16 %v265, %v264
        %v276 = vpack.c.b16 %v267, %v266
        %v277 = vpack.c.b16 %v269, %v268
        %v278 = vpack.c.b16 %v271, %v270
        %v279 = vpack.c.b16 %v273, %v272
        %vm286 = vcmask 785408
        %v288 = vsel %vm286, %v246, 0
        %290 = vmatprep.subr.bf16.mxu0 0
        %291 = vmatpush1.bf16.msra.mxu0 %v274
        %292 = vmatprep.subr.bf16.mxu0 0
        %293 = vmatpush1.bf16.msra.mxu0 %v275
        %294 = vmatprep.subr.bf16.mxu0 0
        %295 = vmatpush1.bf16.msra.mxu0 %v276
        %296 = vmatprep.subr.bf16.mxu0 0
        %297 = vmatpush1.bf16.msra.mxu0 %v277
        %298 = vmatprep.subr.bf16.mxu0 0
        %299 = vmatpush1.bf16.msra.mxu0 %v278
        %300 = vmatprep.subr.bf16.mxu0 0
        %301 = vmatpush1.bf16.msra.mxu0 %v279
        %302 = vmatprep.subr.bf16.mxu0 0
        %303 = vmatpush1.bf16.msra.mxu0 0
        %304 = vmatprep.subr.bf16.mxu0 0
        %305 = vmatpush1.bf16.msra.mxu0 0
        %306 = vmatprep.subr.bf16.mxu0 0
        %307 = vmatpush1.bf16.msra.mxu0 0
        %308 = vmatprep.subr.bf16.mxu0 0
        %309 = vmatpush1.bf16.msra.mxu0 0
        %310 = vmatprep.subr.bf16.mxu0 0
        %311 = vmatpush1.bf16.msra.mxu0 0
        %312 = vmatprep.subr.bf16.mxu0 0
        %313 = vmatpush1.bf16.msra.mxu0 0
        %314 = vmatprep.subr.bf16.mxu0 0
        %315 = vmatpush1.bf16.msra.mxu0 0
        %316 = vmatprep.subr.bf16.mxu0 0
        %317 = vmatpush1.bf16.msra.mxu0 0
        %318 = vmatprep.subr.bf16.mxu0 0
        %319 = vmatpush1.bf16.msra.mxu0 0
        %320 = vmatprep.subr.bf16.mxu0 0
        %321 = vmatpush1.bf16.msra.mxu0 0
        %322 = vmatprep.mubr.bf16.mxu0 0
        %323 = vmatmul.mubr.bf16.gmra.mrb[0].mxu0 %v288
        %v324 = vpop.f32.mrb[0].mxu0
        %v325 = vadd.f32 0.0, %v324
        %v326 = vpop.f32.mrb[0].mxu0
        %v327 = vpop.f32.mrb[0].mxu0
        %v328 = vpop.f32.mrb[0].mxu0
        %329 = vdwg.mxu0
        %v331 = vsel %vm286, %v243, 0
        %333 = vmatprep.subr.bf16.mxu0 0
        %334 = vmatpush1.bf16.msra.mxu0 %v274
        %335 = vmatprep.subr.bf16.mxu0 0
        %336 = vmatpush1.bf16.msra.mxu0 %v275
        %337 = vmatprep.subr.bf16.mxu0 0
        %338 = vmatpush1.bf16.msra.mxu0 %v276
        %339 = vmatprep.subr.bf16.mxu0 0
        %340 = vmatpush1.bf16.msra.mxu0 %v277
        %341 = vmatprep.subr.bf16.mxu0 0
        %342 = vmatpush1.bf16.msra.mxu0 %v278
        %343 = vmatprep.subr.bf16.mxu0 0
        %344 = vmatpush1.bf16.msra.mxu0 %v279
        %345 = vmatprep.subr.bf16.mxu0 0
        %346 = vmatpush1.bf16.msra.mxu0 0
        %347 = vmatprep.subr.bf16.mxu0 0
        %348 = vmatpush1.bf16.msra.mxu0 0
        %349 = vmatprep.subr.bf16.mxu0 0
        %350 = vmatpush1.bf16.msra.mxu0 0
        %351 = vmatprep.subr.bf16.mxu0 0
        %352 = vmatpush1.bf16.msra.mxu0 0
        %353 = vmatprep.subr.bf16.mxu0 0
        %354 = vmatpush1.bf16.msra.mxu0 0
        %355 = vmatprep.subr.bf16.mxu0 0
        %356 = vmatpush1.bf16.msra.mxu0 0
        %357 = vmatprep.subr.bf16.mxu0 0
        %358 = vmatpush1.bf16.msra.mxu0 0
        %359 = vmatprep.subr.bf16.mxu0 0
        %360 = vmatpush1.bf16.msra.mxu0 0
        %361 = vmatprep.subr.bf16.mxu0 0
        %362 = vmatpush1.bf16.msra.mxu0 0
        %363 = vmatprep.subr.bf16.mxu0 0
        %364 = vmatpush1.bf16.msra.mxu0 0
        %365 = vmatprep.mubr.bf16.mxu0 0
        %366 = vmatmul.mubr.bf16.gmra.mrb[0].mxu0 %v331
        %v367 = vpop.f32.mrb[0].mxu0
        %v368 = vadd.f32 %v325, %v367
        %v369 = vpop.f32.mrb[0].mxu0
        %v370 = vpop.f32.mrb[0].mxu0
        %v371 = vpop.f32.mrb[0].mxu0
        %372 = vdwg.mxu0
        %v374 = vsel %vm286, %v249, 0
        %376 = vmatprep.subr.bf16.mxu0 0
        %377 = vmatpush1.bf16.msra.mxu0 %v274
        %378 = vmatprep.subr.bf16.mxu0 0
        %379 = vmatpush1.bf16.msra.mxu0 %v275
        %380 = vmatprep.subr.bf16.mxu0 0
        %381 = vmatpush1.bf16.msra.mxu0 %v276
        %382 = vmatprep.subr.bf16.mxu0 0
        %383 = vmatpush1.bf16.msra.mxu0 %v277
        %384 = vmatprep.subr.bf16.mxu0 0
        %385 = vmatpush1.bf16.msra.mxu0 %v278
        %386 = vmatprep.subr.bf16.mxu0 0
        %387 = vmatpush1.bf16.msra.mxu0 %v279
        %388 = vmatprep.subr.bf16.mxu0 0
        %389 = vmatpush1.bf16.msra.mxu0 0
        %390 = vmatprep.subr.bf16.mxu0 0
        %391 = vmatpush1.bf16.msra.mxu0 0
        %392 = vmatprep.subr.bf16.mxu0 0
        %393 = vmatpush1.bf16.msra.mxu0 0
        %394 = vmatprep.subr.bf16.mxu0 0
        %395 = vmatpush1.bf16.msra.mxu0 0
        %396 = vmatprep.subr.bf16.mxu0 0
        %397 = vmatpush1.bf16.msra.mxu0 0
        %398 = vmatprep.subr.bf16.mxu0 0
        %399 = vmatpush1.bf16.msra.mxu0 0
        %400 = vmatprep.subr.bf16.mxu0 0
        %401 = vmatpush1.bf16.msra.mxu0 0
        %402 = vmatprep.subr.bf16.mxu0 0
        %403 = vmatpush1.bf16.msra.mxu0 0
        %404 = vmatprep.subr.bf16.mxu0 0
        %405 = vmatpush1.bf16.msra.mxu0 0
        %406 = vmatprep.subr.bf16.mxu0 0
        %407 = vmatpush1.bf16.msra.mxu0 0
        %408 = vmatprep.mubr.bf16.mxu0 0
        %409 = vmatmul.mubr.bf16.gmra.mrb[0].mxu0 %v374
        %v410 = vpop.f32.mrb[0].mxu0
        %v411 = vadd.f32 0.0, %v410
        %v412 = vpop.f32.mrb[0].mxu0
        %v413 = vpop.f32.mrb[0].mxu0
        %v414 = vpop.f32.mrb[0].mxu0
        %415 = vdwg.mxu0
        %v416 = vadd.f32 %v368, %v411
        %v417 = vmax.f32 %v416, 1e-10
        %v418 = vrsqrt.pop %v417
        %v419 = vmul.f32 %v417, %v418
        %v420 = vsel %vm286, %v419, 0.0
        %421 = vadd.xlane.f32.xlu0 %v420
        %v422 = vpop.xlane.xlu0 %421
        %v423 = vrcp.pop 96.0
        %v424 = vmul.f32 %v422, %v423
        %v425 = vsub.f32 %v419, %v424
        %v426 = vmul.f32 %v425, %v425
        %v427 = vsel %vm286, %v426, 0.0
        %428 = vadd.xlane.f32.xlu0 %v427
        %v429 = vpop.xlane.xlu0 %428
        %v430 = vmul.f32 %v429, %v423
        %v431 = vadd.f32 %v430, 1e-05
        %v432 = vrsqrt.pop %v431
        %v433 = vmul.f32 %v425, %v432
        %v434 = vld [vmem:[%s2] sm:$0x1]
        %v436 = vlaneseq
        %v437 = vshrl.u32 %v436, 7
        %v438 = vsub.s32 0, %v437
        %v439 = vrot.slane %v434, %v438
        %v441 = vmul.f32 %v433, %v439
        %v442 = vld [vmem:[%s3] sm:$0x1]
        %v444 = vlaneseq
        %v445 = vshrl.u32 %v444, 7
        %v446 = vsub.s32 0, %v445
        %v447 = vrot.slane %v442, %v446
        %v449 = vadd.f32 %v441, %v447
        %v450 = vmul.f32 %v449, 0.70710677
        %v451 = vand.u32 2147483647, %v450
        %v452 = vmul.f32 %v451, 0.3275911
        %v453 = vadd.f32 %v452, 1.0
        %v454 = vrcp.pop %v453
        %v455 = vmul.f32 %v454, 0.5307027
        %v456 = vadd.f32 %v455, -0.72657603
        %v457 = vmul.f32 %v456, %v454
        %v458 = vadd.f32 %v457, 0.7107069
        %v459 = vmul.f32 %v458, %v454
        %v460 = vadd.f32 %v459, -0.14224836
        %v461 = vmul.f32 %v460, %v454
        %v462 = vadd.f32 %v461, 0.1274148
        %v463 = vmul.f32 %v462, %v454
        %v464 = vmul.f32 %v450, %v450
        %v465 = vsub.f32 0.0, %v464
        %v466 = vmul.f32 %v465, 1.442695
        %v467 = vpow.pop %v466
        %v468 = vmul.f32 %v463, %v467
        %vm469 = vcmp.ge.f32.partialorder %v449, 0.0
        %v470 = vsub.f32 1.0, %v468
        %v471 = vsel %vm469, %v470, %v468
        %v472 = vmul.f32 %v449, %v471
        %v473 = vmul.f32 %v472, %v418
        %v474 = vmul.f32 %v473, %v229
        %475 = vst.msk [vmem:[%s227] sm:$0xff] %vm286, %v474
        %s476 = sand.u32 %s119, 1
        %s477 = scalar_lea.sflag [#allocation4], %s476
        %s478 = sand.u32 %s119, 1
        %s479 = smul.addr %s478, 8
        %s480 = scalar_lea.vmem [#allocation7], %s479
        // Predicated region
        $region45: #{tpu_custom_call.1} parent=35 // pred_check
          %p481 = pneg %p129
        $region46: #{tpu_custom_call.1} parent=35 // pred_check_branch
          %483 = sbr.rel (%p481) target = $region48
        $region47: #{tpu_custom_call.1} parent=35 // pred_region
          %s485 = ssub.s32 128, 128
          %486 = vsyncadd %s477, %s485
          %s487 = smul.addr %s22, 128
          %s488 = scalar_lea.hbm %s4, %s487
          %s490 = sshll.u32 %s480, 4
          %s491 = int_to_ptr.vmem [resolvable:$true] %s490
          %493 = dma.vmem_to_hbm [thread:$0]  %s491, 128, %s488, %s477
        $region48: #{tpu_custom_call.1} parent=35 // pred_fallthru
          _
      $region36: #{tpu_custom_call.1} parent=5 // pred_fallthru
        _
      %p494 = scmp.le.s32.totalorder 2, %s17
      // Predicated region
      $region49: #{tpu_custom_call.1} parent=5 // pred_check
        %p495 = pneg %p494
      $region50: #{tpu_custom_call.1} parent=5 // pred_check_branch
        %497 = sbr.rel (%p495) target = $region52
      $region51: #{tpu_custom_call.1} parent=5 // pred_region
        %s498 = ssub.s32 %s17, 2
        // Predicated region
        $region53: #{tpu_custom_call.1} parent=51 // pred_check
          %p499 = pneg %p135
        $region54: #{tpu_custom_call.1} parent=51 // pred_check_branch
          %501 = sbr.rel (%p499) target = $region56
        $region55: #{tpu_custom_call.1} parent=51 // pred_region
          %s502 = sand.u32 %s120, 1
          %s503 = scalar_lea.sflag [#allocation4], %s502
          %s504 = sand.u32 %s120, 1
          %s505 = smul.addr %s504, 8
          %s506 = scalar_lea.vmem [#allocation7], %s505
          %507 = dma.done %s503, 128
        $region56: #{tpu_custom_call.1} parent=51 // pred_fallthru
          _
      $region52: #{tpu_custom_call.1} parent=5 // pred_fallthru
        _
    $region6: #{tpu_custom_call.1} parent=1 // loop_footer
      %s21 = sadd.s32 1, %s17
    $region7: #{tpu_custom_call.1} parent=1 // loop_footer_branch
      %16 = sbr.rel target = $region3
    $region8: #{tpu_custom_call.1} parent=1 // loop_exit
      _
    %508 = vsyncpa [#allocation3], 1
    %s509 = scalar_lea.sflag [#allocation3], 1
    %510 = vsyncpa %s509, 1
    %511 = vsyncpa [#allocation6], 1
    %512 = vsyncpa [#allocation4], 1
    %s513 = scalar_lea.sflag [#allocation4], 1
    %514 = vsyncpa %s513, 1

</llo_original>
